<compile_context>
chip_gen: v6e
topology: v6e:2x2x1
jax: 0.10.0
libtpu: 0.0.40
codegen_flags: <defaults>
</compile_context>

<pallas_src>
import functools

import jax
import jax.numpy as jnp
from jax.experimental import pallas as pl
from jax.experimental.pallas import tpu as pltpu


# ---------------------------------------------------------------------------
# Kernels
# ---------------------------------------------------------------------------
def _rmsnorm_kernel(x_ref, w_ref, o_ref, *, eps):
    # Pass 1: variance in fp32 (rsqrt goes to the EUP slot).
    x = x_ref[...].astype(jnp.float32)                          # (tm, H)
    var = jnp.mean(x * x, axis=-1, keepdims=True)               # (tm, 1)
    inv = jax.lax.rsqrt(var + eps)
    w = w_ref[...].astype(jnp.float32)                          # (1, H)
    # Pass 2: re-read the low-precision tile so a (tm, H) fp32 temporary is
    # not forced to stay live across the reduction (streams per-vreg).
    o_ref[...] = (x_ref[...].astype(jnp.float32) * inv * w).astype(o_ref.dtype)


def _fused_add_rmsnorm_kernel(x_ref, r_ref, w_ref, o_ref, res_ref, *, eps):
    # residual_new = x + residual, stored in the residual dtype.  The HBM
    # buffer of res_ref aliases the residual input (in-place semantics).
    res_ref[...] = (x_ref[...].astype(jnp.float32)
                    + r_ref[...].astype(jnp.float32)).astype(res_ref.dtype)
    # Normalize the *stored* (rounded) residual — vLLM semantics.  Reuse the
    # single fp32 load for both the variance and the final multiply.
    s = res_ref[...].astype(jnp.float32)
    var = jnp.mean(s * s, axis=-1, keepdims=True)
    inv = jax.lax.rsqrt(var + eps)
    w = w_ref[...].astype(jnp.float32)
    o_ref[...] = (s * inv * w).astype(o_ref.dtype)


# ---------------------------------------------------------------------------
# Tiling helpers
# ---------------------------------------------------------------------------
def _round_up(x, m):
    return ((x + m - 1) // m) * m


def _sublane_pack(dtype):
    # Rows per packed sublane group: 8 for 4-byte dtypes, 16 for bf16, 32 int8.
    return max(8, 32 // jnp.dtype(dtype).itemsize)


def _device_kind():
    try:
        return jax.devices()[0].device_kind.lower()
    except Exception:
        return ""


def _plan(n_rows, hidden, dtype, *, fused):
    """Hidden-size-aware, VMEM-budgeted row tiling.

    Returns (tm, n_tiles, vmem_limit_bytes).  tm is always a multiple of the
    sublane pack; ragged tails are handled by Pallas partial-block masking
    (no host-side padding / slicing).
    """
    kind = _device_kind()
    is_v7 = "v7" in kind
    is_v6 = "v6" in kind
    is_v5e = ("v5 lite" in kind) or ("v5e" in kind)

    pack = _sublane_pack(dtype)
    itemsize = jnp.dtype(dtype).itemsize

    # Per-TensorCore VMEM we are willing to request (clamped below physical:
    # v7x = 64 MiB per TC, v5e/v6e = 128 MiB).
    vmem_cap = (56 << 20) if is_v7 else (120 << 20)
    headroom = (8 << 20) + 2 * hidden * 4        # slack + resident weight

    # Generation-aware target row tile (this op is HBM-bandwidth bound).
    if is_v6:
        target = 512 if fused else 1024
    elif is_v5e:
        target = 256 if fused else 512
    elif is_v7:
        target = 384 if fused else 512
    else:
        target = 256 if fused else 512

    # VMEM bytes per tile row: double-buffered I/O tiles + fp32 working set.
    n_tiled_arrays = 4 if fused else 2
    fp32_bufs = 3 if fused else 2
    per_row = 2 * n_tiled_arrays * hidden * itemsize + fp32_bufs * hidden * 4

    budget_rows = max(pack, ((vmem_cap - headroom) // per_row) // pack * pack)
    tm = min(_round_up(target, pack), budget_rows, _round_up(n_rows, pack))
    tm = max(pack, tm)

    n_tiles = pl.cdiv(n_rows, tm)
    # Only v7x has 2 TensorCores; give each one a tile when the input is small.
    if is_v7 and n_tiles == 1 and n_rows >= 2 * pack:
        tm = max(pack, _round_up(pl.cdiv(n_rows, 2), pack))
        n_tiles = pl.cdiv(n_rows, tm)

    vmem_limit = int(min(vmem_cap, tm * per_row + headroom))
    return tm, n_tiles, vmem_limit


# ---------------------------------------------------------------------------
# Wrappers
# ---------------------------------------------------------------------------
def rmsnorm(x, weight, eps=1e-6):
    orig_shape = x.shape
    hidden = orig_shape[-1]
    x2d = x.reshape(-1, hidden)
    n_rows = x2d.shape[0]
    w2d = weight.reshape(1, hidden)

    tm, n_tiles, vmem_limit = _plan(n_rows, hidden, x.dtype, fused=False)

    out = pl.pallas_call(
        functools.partial(_rmsnorm_kernel, eps=eps),
        out_shape=jax.ShapeDtypeStruct((n_rows, hidden), x.dtype),
        grid_spec=pltpu.PrefetchScalarGridSpec(
            num_scalar_prefetch=0,
            grid=(n_tiles,),
            in_specs=[
                pl.BlockSpec((tm, hidden), lambda i: (i, 0)),
                # Constant block index -> weight fetched once & kept resident.
                pl.BlockSpec((1, hidden), lambda i: (0, 0)),
            ],
            out_specs=pl.BlockSpec((tm, hidden), lambda i: (i, 0)),
        ),
        compiler_params=pltpu.CompilerParams(
            dimension_semantics=("parallel",),
            vmem_limit_bytes=vmem_limit,
        ),
    )(x2d, w2d)
    return out.reshape(orig_shape)


def fused_add_rmsnorm(x, residual, weight, eps=1e-6):
    orig_shape = x.shape
    hidden = orig_shape[-1]
    x2d = x.reshape(-1, hidden)
    r2d = residual.reshape(-1, hidden)
    n_rows = x2d.shape[0]
    w2d = weight.reshape(1, hidden)

    tm, n_tiles, vmem_limit = _plan(n_rows, hidden, x.dtype, fused=True)

    out, res_out = pl.pallas_call(
        functools.partial(_fused_add_rmsnorm_kernel, eps=eps),
        out_shape=(
            jax.ShapeDtypeStruct((n_rows, hidden), x.dtype),
            jax.ShapeDtypeStruct((n_rows, hidden), residual.dtype),
        ),
        grid_spec=pltpu.PrefetchScalarGridSpec(
            num_scalar_prefetch=0,
            grid=(n_tiles,),
            in_specs=[
                pl.BlockSpec((tm, hidden), lambda i: (i, 0)),   # x
                pl.BlockSpec((tm, hidden), lambda i: (i, 0)),   # residual
                pl.BlockSpec((1, hidden), lambda i: (0, 0)),    # weight
            ],
            out_specs=(
                pl.BlockSpec((tm, hidden), lambda i: (i, 0)),   # out
                pl.BlockSpec((tm, hidden), lambda i: (i, 0)),   # residual_new
            ),
        ),
        # In-place residual-update semantics: residual input (idx 1) aliases
        # residual output (idx 1).  No host-side padding exists, so the alias
        # always refers to the caller's (reshaped) residual buffer.
        input_output_aliases={1: 1},
        compiler_params=pltpu.CompilerParams(
            dimension_semantics=("parallel",),
            vmem_limit_bytes=vmem_limit,
        ),
    )(x2d, r2d, w2d)
    return out.reshape(orig_shape), res_out.reshape(orig_shape)


# ---------------------------------------------------------------------------
# Module-like wrapper (mirrors the PyTorch RMSNorm forward)
# ---------------------------------------------------------------------------
class RMSNorm:
    def __init__(self, hidden_size: int, eps: float = 1e-6):
        self.hidden_size = hidden_size
        self.variance_epsilon = eps
        # nn.Parameter(torch.ones(hidden_size)) — deterministic init.
        self.weight = jnp.ones((hidden_size,), dtype=jnp.bfloat16)

    def __call__(self, x, residual=None):
        if residual is not None:
            # PyTorch mutates x / residual in place and returns (x, residual);
            # functionally we return (normed, residual_new) with the residual
            # output aliased onto the residual input buffer.
            return fused_add_rmsnorm(x, residual, self.weight,
                                     self.variance_epsilon)
        return rmsnorm(x, self.weight, self.variance_epsilon)

    def __repr__(self):
        return (f"{self.__class__.__name__}(hidden_size={self.hidden_size}, "
                f"eps={self.variance_epsilon})")


# ---------------------------------------------------------------------------
# Reference (pure JAX) for sanity check
# ---------------------------------------------------------------------------
def _ref_rmsnorm(x, w, eps):
    xf = x.astype(jnp.float32)
    var = jnp.mean(xf * xf, axis=-1, keepdims=True)
    return (xf * jax.lax.rsqrt(var + eps) * w.astype(jnp.float32)).astype(x.dtype)


if __name__ == "__main__":
    key = jax.random.PRNGKey(0)
    k1, k2, k3 = jax.random.split(key, 3)

    batch, seq, hidden = 2, 8, 32
    x = jax.random.normal(k1, (batch, seq, hidden), dtype=jnp.float32).astype(jnp.bfloat16)
    residual = jax.random.normal(k2, (batch, seq, hidden), dtype=jnp.float32).astype(jnp.bfloat16)

    norm = RMSNorm(hidden, eps=1e-6)

    # References (fused path conceptually updates the residual buffer).
    ref = _ref_rmsnorm(x, norm.weight, norm.variance_epsilon)
    res_ref = (x.astype(jnp.float32) + residual.astype(jnp.float32)).astype(jnp.bfloat16)
    out2_ref = _ref_rmsnorm(res_ref, norm.weight, norm.variance_epsilon)

    # Path 1: plain RMSNorm
    out = jax.block_until_ready(norm(x))
    assert out.shape == x.shape
    assert jnp.allclose(out.astype(jnp.float32), ref.astype(jnp.float32),
                        atol=2e-2, rtol=2e-2)

    # Path 2: fused residual add + RMSNorm
    out2, res2 = norm(x, residual)
    out2 = jax.block_until_ready(out2)
    res2 = jax.block_until_ready(res2)
    assert jnp.allclose(res2.astype(jnp.float32), res_ref.astype(jnp.float32),
                        atol=2e-2, rtol=2e-2)
    assert jnp.allclose(out2.astype(jnp.float32), out2_ref.astype(jnp.float32),
                        atol=2e-2, rtol=2e-2)

    # Ragged row count (exercises the in-kernel partial-block path, no host
    # padding): 3*7 = 21 rows.
    xr = jax.random.normal(k3, (3, 7, hidden), dtype=jnp.float32).astype(jnp.bfloat16)
    rr = jax.random.normal(k2, (3, 7, hidden), dtype=jnp.float32).astype(jnp.bfloat16)
    out_r = jax.block_until_ready(norm(xr))
    ref_r = _ref_rmsnorm(xr, norm.weight, norm.variance_epsilon)
    assert out_r.shape == xr.shape
    assert jnp.allclose(out_r.astype(jnp.float32), ref_r.astype(jnp.float32),
                        atol=2e-2, rtol=2e-2)

    out_r2, res_r2 = norm(xr, rr)
    out_r2 = jax.block_until_ready(out_r2)
    res_r2 = jax.block_until_ready(res_r2)
    res_r_ref = (xr.astype(jnp.float32) + rr.astype(jnp.float32)).astype(jnp.bfloat16)
    out_r2_ref = _ref_rmsnorm(res_r_ref, norm.weight, norm.variance_epsilon)
    assert jnp.allclose(res_r2.astype(jnp.float32), res_r_ref.astype(jnp.float32),
                        atol=2e-2, rtol=2e-2)
    assert jnp.allclose(out_r2.astype(jnp.float32), out_r2_ref.astype(jnp.float32),
                        atol=2e-2, rtol=2e-2)

    print("KERNEL_OK")
</pallas_src>

<mosaic_0001>
module attributes {stable_mosaic.version = 11 : i64} {
  func.func @_rmsnorm_kernel(%arg0: i32, %arg1: memref<16x32xbf16, #tpu.memory_space<vmem>>, %arg2: memref<1x32xbf16, #tpu.memory_space<vmem>>, %arg3: memref<16x32xbf16, #tpu.memory_space<vmem>>) attributes {dimension_semantics = [#tpu.dimension_semantics<parallel>], iteration_bounds = array<i64: 1>, scalar_prefetch = 0 : i64, scratch_operands = 0 : i64, tpu.core_type = #tpu.core_type<tc>, window_params = [{transform_indices = @transform_0, window_bounds = array<i64: 16, 32>}, {pipeline_mode = #tpu.pipeline_mode<synchronous>, transform_indices = @transform_1, window_bounds = array<i64: 1, 32>}, {transform_indices = @transform_2, window_bounds = array<i64: 16, 32>}]} {
    %c0 = arith.constant 0 : index
    %c0_0 = arith.constant 0 : index
    %0 = vector.load %arg1[%c0, %c0_0] : memref<16x32xbf16, #tpu.memory_space<vmem>>, vector<16x32xbf16>
    %1 = arith.extf %0 : vector<16x32xbf16> to vector<16x32xf32>
    %2 = arith.mulf %1, %1 : vector<16x32xf32>
    %cst = arith.constant dense<0.000000e+00> : vector<16xf32>
    %3 = vector.multi_reduction <add>, %2, %cst [1] : vector<16x32xf32> to vector<16xf32>
    %4 = vector.shape_cast %3 : vector<16xf32> to vector<16x1xf32>
    %cst_1 = arith.constant 3.200000e+01 : f32
    %5 = vector.broadcast %cst_1 : f32 to vector<16x1xf32>
    %6 = arith.divf %4, %5 : vector<16x1xf32>
    %cst_2 = arith.constant 9.99999997E-7 : f32
    %7 = vector.broadcast %cst_2 : f32 to vector<16x1xf32>
    %8 = arith.addf %6, %7 : vector<16x1xf32>
    %9 = math.rsqrt %8 : vector<16x1xf32>
    %c0_3 = arith.constant 0 : index
    %c0_4 = arith.constant 0 : index
    %10 = vector.load %arg2[%c0_3, %c0_4] : memref<1x32xbf16, #tpu.memory_space<vmem>>, vector<1x32xbf16>
    %11 = arith.extf %10 : vector<1x32xbf16> to vector<1x32xf32>
    %c0_5 = arith.constant 0 : index
    %c0_6 = arith.constant 0 : index
    %12 = vector.load %arg1[%c0_5, %c0_6] : memref<16x32xbf16, #tpu.memory_space<vmem>>, vector<16x32xbf16>
    %13 = arith.extf %12 : vector<16x32xbf16> to vector<16x32xf32>
    %14 = vector.broadcast %9 : vector<16x1xf32> to vector<16x32xf32>
    %15 = arith.mulf %13, %14 : vector<16x32xf32>
    %16 = vector.broadcast %11 : vector<1x32xf32> to vector<16x32xf32>
    %17 = arith.mulf %15, %16 : vector<16x32xf32>
    %18 = arith.truncf %17 : vector<16x32xf32> to vector<16x32xbf16>
    %c0_7 = arith.constant 0 : index
    %c0_8 = arith.constant 0 : index
    %19 = vector.load %arg3[%c0_7, %c0_8] : memref<16x32xbf16, #tpu.memory_space<vmem>>, vector<16x32xbf16>
    tpu.vector_store %arg3[%c0_7, %c0_8], %18 {strides = array<i32>} : memref<16x32xbf16, #tpu.memory_space<vmem>>, vector<16x32xbf16>,
    return
  }
  func.func @transform_0(%arg0: i32) -> (i32, i32) {
    %c0_i32 = arith.constant 0 : i32
    %c0_i32_0 = arith.constant 0 : i32
    return %arg0, %c0_i32 : i32, i32
  }
  func.func @transform_1(%arg0: i32) -> (i32, i32) {
    %c0_i32 = arith.constant 0 : i32
    %c0_i32_0 = arith.constant 0 : i32
    %c0_i32_1 = arith.constant 0 : i32
    return %c0_i32, %c0_i32_0 : i32, i32
  }
  func.func @transform_2(%arg0: i32) -> (i32, i32) {
    %c0_i32 = arith.constant 0 : i32
    %c0_i32_0 = arith.constant 0 : i32
    return %arg0, %c0_i32 : i32, i32
  }
}

</mosaic_0001>

<llo_original>
// kernel: tpu_custom_call.1
$region0: #{tpu_custom_call.1}
  #allocation0 [shape = 'u32[]', space=smem, size = 0x4, offset = 0x4, fixed_abs, tag = 'smem constant byte address 0x4 - core index']
  #allocation1 [shape = 'u32[144,128]{1,0:T(1,128)}', space=vmem, size = 0x12000, scoped, tag = 'internal scratch']
  %s0 = inlined_call_operand.hbm [shape: bf16[16,32], index: 0, kind: input, shape index: {}]
  %s1 = inlined_call_operand.vmem [shape: bf16[1,32], index: 1, kind: input, shape index: {}]
  %s2 = inlined_call_operand.hbm [shape: bf16[16,32], index: 2, kind: output, shape index: {}]
  %s3 = sld [smem:[#allocation0]]
  $region22: #{tpu_custom_call.1} parent=0
    _
  %s5 = ssub.s32 1, %s3
  %s6 = scalar_select 0, %s5, %s3
  $region1: #{tpu_custom_call.1} parent=0
    #allocation2 [shape = 'u8[4096]{0}', space=vmem, size = 0x1000, scoped, tag = 'input window, operand 0, single buffered']
    #allocation3 [shape = 's32[1]{0}', space=sflag, size = 0x4, scoped, tag = 'scoped memory for tpu_custom_call.1']
    #allocation4 [shape = 's32[1]{0}', space=sflag, size = 0x4, scoped, tag = 'scoped memory for tpu_custom_call.1']
    #allocation5 [shape = 'u8[4096]{0}', space=vmem, size = 0x1000, scoped, tag = 'output window, operand 0, single buffered']
    %7 = vsyncpa [#allocation3], 0
    %8 = vsyncpa [#allocation4], 0
    // Predicated region
    $region2: #{tpu_custom_call.1} parent=1 // pred_check
      _
    $region3: #{tpu_custom_call.1} parent=1 // pred_check_branch
      %10 = sbr.rel (0) target = $region5
    $region4: #{tpu_custom_call.1} parent=1 // pred_region
      %s12 = ssub.s32 128, 128
      %13 = vsyncadd [#allocation3], %s12
      %s14 = sshll.u32 [#allocation2], 4
      %s15 = int_to_ptr.vmem [resolvable:$true] %s14
      %20 = dma.hbm_to_vmem [thread:$0]  %s0, 128, %s15, [#allocation3], 64, 64, 4
    $region5: #{tpu_custom_call.1} parent=1 // pred_fallthru
      _
    // Predicated region
    $region6: #{tpu_custom_call.1} parent=1 // pred_check
      _
    $region7: #{tpu_custom_call.1} parent=1 // pred_check_branch
      %22 = sbr.rel (0) target = $region9
    $region8: #{tpu_custom_call.1} parent=1 // pred_region
      _
    $region9: #{tpu_custom_call.1} parent=1 // pred_fallthru
      _
    // Predicated region
    $region10: #{tpu_custom_call.1} parent=1 // pred_check
      _
    $region11: #{tpu_custom_call.1} parent=1 // pred_check_branch
      %24 = sbr.rel (0) target = $region13
    $region12: #{tpu_custom_call.1} parent=1 // pred_region
      %25 = dma.done [#allocation3], 128
    $region13: #{tpu_custom_call.1} parent=1 // pred_fallthru
      _
    %v26 = vld [vmem:[#allocation2] sm:$0xf]
    %v27 = vld [vmem:[#allocation2 + $0x4] sm:$0xf]
    %v28 = vunpack.c.l.bf16 %v26
    %v29 = vunpack.c.l.bf16 %v27
    %v30 = vmul.f32 %v28, %v28
    %v31 = vmul.f32 %v29, %v29
    %vm32 = vcmask 261120
    %v33 = vsel %vm32, %v30, 0.0
    %34 = vadd.xlane.f32.xlu0 %v33
    %v35 = vpop.xlane.xlu0 %34
    %v36 = vsel %vm32, %v31, 0.0
    %37 = vadd.xlane.f32.xlu0 %v36
    %v38 = vpop.xlane.xlu0 %37
    %v39 = vrcp.pop 32.0
    %v40 = vmul.f32 %v35, %v39
    %v41 = vmul.f32 %v38, %v39
    %v42 = vadd.f32 %v40, 1e-06
    %v43 = vadd.f32 %v41, 1e-06
    %v44 = vrsqrt.pop %v42
    %v45 = vrsqrt.pop %v43
    %v46 = vld [vmem:[%s1] sm:$0x1]
    %v47 = vunpack.c.l.bf16 %v46
    %v48 = vmul.f32 %v28, %v44
    %v49 = vmul.f32 %v29, %v45
    %v50 = vlaneseq
    %v51 = vshrl.u32 %v50, 7
    %v52 = vsub.s32 0, %v51
    %v53 = vrot.slane %v47, %v52
    %v54 = vmul.f32 %v48, %v53
    %v55 = vmul.f32 %v49, %v53
    %v56 = vpack.c.bf16 %v55, %v54
    %v58 = vunpack.c.l.b16 %v56
    %v59 = vunpack.c.h.b16 %v56
    %v60 = vpack.c.b16 %v58, %v58
    %v61 = vpack.c.b16 %v59, %v59
    %vm64 = vcmask 257024
    %65 = vst.msk [vmem:[#allocation5] sm:$0xf] %vm64, %v60
    %66 = vst.msk [vmem:[#allocation5 + $0x4] sm:$0xf] %vm64, %v61
    // Predicated region
    $region14: #{tpu_custom_call.1} parent=1 // pred_check
      _
    $region15: #{tpu_custom_call.1} parent=1 // pred_check_branch
      %68 = sbr.rel (0) target = $region17
    $region16: #{tpu_custom_call.1} parent=1 // pred_region
      %s70 = ssub.s32 128, 128
      %71 = vsyncadd [#allocation4], %s70
      %s72 = sshll.u32 [#allocation5], 4
      %s73 = int_to_ptr.vmem [resolvable:$true] %s72
      %78 = dma.vmem_to_hbm [thread:$0]  %s73, 128, %s2, [#allocation4], 64, 64, 4
    $region17: #{tpu_custom_call.1} parent=1 // pred_fallthru
      _
    // Predicated region
    $region18: #{tpu_custom_call.1} parent=1 // pred_check
      _
    $region19: #{tpu_custom_call.1} parent=1 // pred_check_branch
      %80 = sbr.rel (0) target = $region21
    $region20: #{tpu_custom_call.1} parent=1 // pred_region
      %81 = dma.done [#allocation4], 128
    $region21: #{tpu_custom_call.1} parent=1 // pred_fallthru
      _
    %82 = vsyncpa [#allocation3], 1
    %83 = vsyncpa [#allocation4], 1

</llo_original>
